<compile_context>
chip_gen: v7x
topology: tpu7x:2x2x1
jax: 0.10.0
libtpu: 0.0.40
codegen_flags: <defaults>
</compile_context>

<pallas_src>
import jax
import jax.numpy as jnp
from jax import lax
from jax.experimental import pallas as pl
from jax.experimental.pallas import tpu as pltpu

_BN_EPS = 1e-5
_NEG_SLOPE = 0.2
# Below this contraction size the layer is HBM-bandwidth bound, so recomputing
# the matmul in phase 2 is cheaper than round-tripping conv rows through HBM.
_RECOMPUTE_K_MAX = 1024


def _round_up(x, m):
  return (x + m - 1) // m * m


def _device_kind():
  try:
    return jax.devices()[0].device_kind.lower()
  except Exception:  # pylint: disable=broad-except
    return ""


def _vmem_limit_bytes(kind):
  # v7x: 64 MiB physical VMEM per TensorCore; v5e / v6e: 128 MiB.
  if "v7" in kind:
    return 48 * 1024 * 1024
  return 96 * 1024 * 1024


def _tile_cap(k, cout_pad, vmem_limit, recompute, n_split):
  """Max M-rows per tile from the VMEM budget (weights are single-buffered)."""
  weight_bytes = k * cout_pad * 2                      # one bf16 copy (scratch)
  stats_bytes = 2 * (8 * cout_pad * 4)                 # stats block, 2 buffers
  misc_bytes = 4 * (1 * cout_pad * 4)                  # scale/shift blocks
  if recompute:
    # phase 2 is the fattest: patches (bf16, 2 bufs) + f32 output (2 bufs).
    per_row = 2 * (k * 2) + 2 * (cout_pad * 4)
  else:
    per_row = max(2 * (k * 2) + 2 * (cout_pad * 2),    # phase 1
                  2 * (cout_pad * 2) + 2 * (cout_pad * 4))  # phase 2
  budget = int((vmem_limit - weight_bytes - stats_bytes - misc_bytes) * 0.85)
  cap = max(256, budget // max(per_row, 1))
  del n_split
  return max(16, min(cap, 4096))


def _choose_tile_m(m, cap, n_split):
  """Prefer a tile that divides M exactly (no zero-pad copy of the patches)."""
  cap = max(16, cap) // 16 * 16
  start = min(cap, m) // 16 * 16
  for tm in range(start, 15, -16):
    if m % (tm * n_split) == 0:
      return tm, m
  tm = min(cap, _round_up(m, 16))
  return tm, _round_up(m, tm * n_split)


# ---------------------------------------------------------------------------
# In-kernel helpers.
# ---------------------------------------------------------------------------
def _load_weights_once(w_hbm_ref, w_vmem_ref, sem_ref):
  """Copy the grid-invariant weight matrix HBM -> single VMEM buffer.

  Guarded on the first *inner* grid step so it runs exactly once per core
  (grids are (n_split, tiles_per_core) with the outer axis 'parallel')."""
  @pl.when(pl.program_id(1) == 0)
  def _():
    cp = pltpu.make_async_copy(w_hbm_ref, w_vmem_ref, sem_ref)
    cp.start()
    cp.wait()


def _accumulate_stats(step, conv, stats_ref):
  """Accumulate per-channel sum (row 0) and sum-of-squares (row 1).

  The 8-sublane-tall resident block keeps its pipelined load/store unmasked.
  TODO(synk): full-tile (tm//8, 8, C) partial sums would also remove the
  masked single-row read-modify-writes below."""
  @pl.when(step == 0)
  def _():
    stats_ref[...] = jnp.zeros_like(stats_ref)

  stats_ref[0:1, :] += jnp.sum(conv, axis=0, keepdims=True)
  stats_ref[1:2, :] += jnp.sum(conv * conv, axis=0, keepdims=True)


# ---------------------------------------------------------------------------
# Phase-1 kernels (matmul for batch stats; optionally bf16 conv writeback).
# ---------------------------------------------------------------------------
def _stats_kernel(w_hbm_ref, p_ref, stats_ref, w_vmem, w_sem):
  """Recompute path: stats only, conv rows never touch HBM."""
  step = pl.program_id(1)
  _load_weights_once(w_hbm_ref, w_vmem, w_sem)
  conv = jnp.dot(p_ref[...], w_vmem[...], preferred_element_type=jnp.float32)
  _accumulate_stats(step, conv, stats_ref)


def _stats_conv_kernel(w_hbm_ref, p_ref, conv_ref, stats_ref, w_vmem, w_sem):
  """Store path (deep layers): bf16 conv writeback + stats."""
  step = pl.program_id(1)
  _load_weights_once(w_hbm_ref, w_vmem, w_sem)
  conv = jnp.dot(p_ref[...], w_vmem[...], preferred_element_type=jnp.float32)
  conv_ref[...] = conv.astype(jnp.bfloat16)      # half the inter-phase traffic
  _accumulate_stats(step, conv, stats_ref)


# ---------------------------------------------------------------------------
# Phase-2 kernels (BN affine + LeakyReLU).
# ---------------------------------------------------------------------------
def _matmul_bn_lrelu_kernel(w_hbm_ref, p_ref, scale_ref, shift_ref, o_ref,
                            w_vmem, w_sem):
  """Recompute path: redo the matmul, then normalize + LeakyReLU(0.2)."""
  _load_weights_once(w_hbm_ref, w_vmem, w_sem)
  conv = jnp.dot(p_ref[...], w_vmem[...], preferred_element_type=jnp.float32)
  y = conv * scale_ref[...] + shift_ref[...]
  o_ref[...] = jnp.maximum(y, _NEG_SLOPE * y).astype(o_ref.dtype)


def _bn_lrelu_kernel(conv_ref, scale_ref, shift_ref, o_ref):
  """Store path: stream bf16 conv rows through normalize + LeakyReLU(0.2)."""
  y = conv_ref[...].astype(jnp.float32) * scale_ref[...] + shift_ref[...]
  o_ref[...] = jnp.maximum(y, _NEG_SLOPE * y).astype(o_ref.dtype)


# ---------------------------------------------------------------------------
# Plain-JAX glue: im2col patch extraction (index shuffling only).
# ---------------------------------------------------------------------------
def _im2col_nhwc(x_nhwc, kh, kw, stride, pad):
  n, h, w, c = x_nhwc.shape
  xp = jnp.pad(x_nhwc, ((0, 0), (pad, pad), (pad, pad), (0, 0)))
  oh = (h + 2 * pad - kh) // stride + 1
  ow = (w + 2 * pad - kw) // stride + 1
  cols = []
  for i in range(kh):
    for j in range(kw):
      patch = lax.slice(
          xp,
          (0, i, j, 0),
          (n, i + stride * (oh - 1) + 1, j + stride * (ow - 1) + 1, c),
          (1, stride, stride, 1),
      )  # (n, oh, ow, c)
      cols.append(patch)
  patches = jnp.stack(cols, axis=3)  # (n, oh, ow, kh*kw, c) -> K order (i,j,c)
  return patches.reshape(n * oh * ow, kh * kw * c), (n, oh, ow)


def unet_down_forward_nhwc(x_nhwc, w_oihw, gamma, beta):
  """Core NHWC forward (preferred API: keep the model NHWC end-to-end)."""
  cout, cin, kh, kw = w_oihw.shape

  # bf16 MXU operands (halves HBM traffic of the im2col blow-up); f32 acc.
  x_bf16 = x_nhwc.astype(jnp.bfloat16)
  patches, (n, oh, ow) = _im2col_nhwc(x_bf16, kh, kw, stride=2, pad=1)

  m = n * oh * ow
  k = kh * kw * cin                       # contraction size, NOT zero-padded
  cout_pad = _round_up(cout, 128)         # lane-dense output stores

  kind = _device_kind()
  vmem_limit = _vmem_limit_bytes(kind)
  n_split = 2 if "v7" in kind else 1      # shard row tiles over v7x's two TCs
  recompute = k <= _RECOMPUTE_K_MAX

  cap = _tile_cap(k, cout_pad, vmem_limit, recompute, n_split)
  tm, m_pad = _choose_tile_m(m, cap, n_split)
  tiles_per = m_pad // (tm * n_split)
  num_tiles = m_pad // tm

  if m_pad > m:
    # Zero rows contribute exactly 0 to both stats sums.
    patches = jnp.pad(patches, ((0, m_pad - m), (0, 0)))

  # Weight matrix (k, cout_pad) bf16, K order (i, j, cin) matching im2col.
  w_mat = jnp.transpose(w_oihw, (2, 3, 1, 0)).reshape(k, cout)
  w_mat = jnp.pad(w_mat.astype(jnp.bfloat16), ((0, 0), (0, cout_pad - cout)))

  weight_spec = pl.BlockSpec(memory_space=pl.ANY)      # raw HBM; manual DMA
  patch_spec = pl.BlockSpec((tm, k), lambda c, i: (c * tiles_per + i, 0))
  stats_spec = pl.BlockSpec((8, cout_pad), lambda c, i: (c, 0))
  stats_shape = jax.ShapeDtypeStruct((n_split * 8, cout_pad), jnp.float32)
  affine_spec = pl.BlockSpec((1, cout_pad), lambda c, i: (0, 0))
  out_spec_2d = pl.BlockSpec((tm, cout_pad),
                             lambda c, i: (c * tiles_per + i, 0))

  w_scratch = pltpu.VMEM((k, cout_pad), jnp.bfloat16)  # single weight buffer
  dma_sem = pltpu.SemaphoreType.DMA(())

  grid2d = (n_split, tiles_per)
  params2d = pltpu.CompilerParams(
      dimension_semantics=("parallel", "arbitrary"),
      vmem_limit_bytes=vmem_limit)

  # --- Phase 1: tiled matmul + batch-stat accumulation ----------------------
  if recompute:
    stats = pl.pallas_call(
        _stats_kernel,
        grid=grid2d,
        in_specs=[weight_spec, patch_spec],
        out_specs=stats_spec,
        out_shape=stats_shape,
        scratch_shapes=[w_scratch, dma_sem],
        compiler_params=params2d,
        cost_estimate=pl.CostEstimate(
            flops=2 * m_pad * k * cout_pad,
            transcendentals=0,
            bytes_accessed=m_pad * k * 2 + k * cout_pad * 2),
    )(w_mat, patches)
    conv_rows = None
  else:
    conv_rows, stats = pl.pallas_call(
        _stats_conv_kernel,
        grid=grid2d,
        in_specs=[weight_spec, patch_spec],
        out_specs=[out_spec_2d.replace(block_shape=(tm, cout_pad))
                   if False else
                   pl.BlockSpec((tm, cout_pad),
                                lambda c, i: (c * tiles_per + i, 0)),
                   stats_spec],
        out_shape=[jax.ShapeDtypeStruct((m_pad, cout_pad), jnp.bfloat16),
                   stats_shape],
        scratch_shapes=[w_scratch, dma_sem],
        compiler_params=params2d,
        cost_estimate=pl.CostEstimate(
            flops=2 * m_pad * k * cout_pad,
            transcendentals=0,
            bytes_accessed=(m_pad * k * 2 + k * cout_pad * 2
                            + m_pad * cout_pad * 2)),
    )(w_mat, patches)

  # --- Per-channel BN(train) affine from batch stats (tiny host JAX, f32) ---
  count = jnp.float32(m)                       # true M, excludes padded rows
  stats3 = stats.reshape(n_split, 8, cout_pad)
  sum_c = jnp.sum(stats3[:, 0, :], axis=0)
  sq_c = jnp.sum(stats3[:, 1, :], axis=0)
  mean = sum_c / count
  var = jnp.maximum(sq_c / count - mean * mean, 0.0)
  inv_std = lax.rsqrt(var + _BN_EPS)
  gamma_p = jnp.pad(gamma.astype(jnp.float32), (0, cout_pad - cout))
  beta_p = jnp.pad(beta.astype(jnp.float32), (0, cout_pad - cout))
  scale = (gamma_p * inv_std).reshape(1, cout_pad)
  shift = (beta_p - mean * gamma_p * inv_std).reshape(1, cout_pad)

  out_shape = jax.ShapeDtypeStruct((m_pad, cout_pad), jnp.float32)

  # --- Phase 2: normalize + LeakyReLU ---------------------------------------
  if recompute:
    out_rows = pl.pallas_call(
        _matmul_bn_lrelu_kernel,
        grid=grid2d,
        in_specs=[weight_spec, patch_spec, affine_spec, affine_spec],
        out_specs=out_spec_2d,
        out_shape=out_shape,
        scratch_shapes=[w_scratch, dma_sem],
        compiler_params=params2d,
        cost_estimate=pl.CostEstimate(
            flops=2 * m_pad * k * cout_pad + 4 * m_pad * cout_pad,
            transcendentals=0,
            bytes_accessed=(m_pad * k * 2 + k * cout_pad * 2
                            + m_pad * cout_pad * 4)),
    )(w_mat, patches, scale, shift)
  else:
    out_rows = pl.pallas_call(
        _bn_lrelu_kernel,
        grid=(num_tiles,),
        in_specs=[
            pl.BlockSpec((tm, cout_pad), lambda i: (i, 0)),
            pl.BlockSpec((1, cout_pad), lambda i: (0, 0)),
            pl.BlockSpec((1, cout_pad), lambda i: (0, 0)),
        ],
        out_specs=pl.BlockSpec((tm, cout_pad), lambda i: (i, 0)),
        out_shape=out_shape,
        compiler_params=pltpu.CompilerParams(
            dimension_semantics=("parallel",),
            vmem_limit_bytes=vmem_limit),
        cost_estimate=pl.CostEstimate(
            flops=4 * m_pad * cout_pad,
            transcendentals=0,
            bytes_accessed=m_pad * cout_pad * 2 + m_pad * cout_pad * 4),
    )(conv_rows, scale, shift)

  # TODO(synk): in a full pix2pix model let the next UNetDown consume this
  # padded-Cout NHWC buffer directly; the slice below copies when cout < 128.
  return out_rows[:m, :cout].reshape(n, oh, ow, cout)


@jax.jit
def unet_down_forward(x_nchw, w_oihw, gamma, beta):
  """NCHW wrapper matching the PyTorch module interface.

  TODO(synk): the NCHW<->NHWC transposes here cost a full extra HBM
  round-trip of the activation; chain unet_down_forward_nhwc directly when
  embedding this layer in a NHWC model.
  """
  x_nhwc = jnp.transpose(x_nchw, (0, 2, 3, 1))
  out_nhwc = unet_down_forward_nhwc(x_nhwc, w_oihw, gamma, beta)
  return jnp.transpose(out_nhwc, (0, 3, 1, 2))


def _reference_forward(x_nchw, w_oihw, gamma, beta):
  """Pure-JAX reference mirroring PyTorch semantics (training-mode BN)."""
  conv = lax.conv_general_dilated(
      x_nchw.astype(jnp.float32),
      w_oihw.astype(jnp.float32),
      window_strides=(2, 2),
      padding=((1, 1), (1, 1)),
      dimension_numbers=("NCHW", "OIHW", "NCHW"),
  )
  mean = jnp.mean(conv, axis=(0, 2, 3), keepdims=True)
  var = jnp.mean((conv - mean) ** 2, axis=(0, 2, 3), keepdims=True)
  y = (conv - mean) * lax.rsqrt(var + _BN_EPS)
  y = y * gamma.reshape(1, -1, 1, 1) + beta.reshape(1, -1, 1, 1)
  return jnp.where(y > 0.0, y, _NEG_SLOPE * y)


if __name__ == "__main__":
  key = jax.random.PRNGKey(0)
  k_x, k_w = jax.random.split(key)

  N, C_IN, H, W = 2, 4, 16, 16
  C_OUT = 8

  x = jax.random.normal(k_x, (N, C_IN, H, W), dtype=jnp.float32)
  # Conv2d weight (Cout, Cin, 4, 4), bias=False; deterministic synthetic init.
  w = jax.random.normal(k_w, (C_OUT, C_IN, 4, 4), dtype=jnp.float32) * 0.1
  # BatchNorm2d default init: gamma = 1, beta = 0.
  gamma = jnp.ones((C_OUT,), dtype=jnp.float32)
  beta = jnp.zeros((C_OUT,), dtype=jnp.float32)

  out = jax.block_until_ready(unet_down_forward(x, w, gamma, beta))
  assert out.shape == (N, C_OUT, H // 2, W // 2), out.shape

  # Compare against a reference computed on bf16-rounded operands: the kernel
  # intentionally feeds the MXU bf16 (with f32 accumulation), so this isolates
  # kernel correctness from the operand-precision choice.
  x_r = x.astype(jnp.bfloat16).astype(jnp.float32)
  w_r = w.astype(jnp.bfloat16).astype(jnp.float32)
  ref = jax.block_until_ready(_reference_forward(x_r, w_r, gamma, beta))
  max_err = float(jnp.max(jnp.abs(out - ref)))
  assert jnp.allclose(out, ref, rtol=2e-2, atol=2e-2), max_err

  print("KERNEL_OK")
</pallas_src>

<mosaic_0001>
module attributes {stable_mosaic.version = 11 : i64} {
  func.func @_stats_kernel(%arg0: i32, %arg1: i32, %arg2: memref<64x128xbf16, #tpu.memory_space<any>>, %arg3: memref<128x64xbf16, #tpu.memory_space<vmem>>, %arg4: memref<8x128xf32, #tpu.memory_space<vmem>>, %arg5: memref<64x128xbf16, #tpu.memory_space<vmem>>, %arg6: memref<!tpu.dma_semaphore, #tpu.memory_space<semaphore_mem>>) attributes {dimension_semantics = [#tpu.dimension_semantics<parallel>, #tpu.dimension_semantics<arbitrary>], iteration_bounds = array<i64: 1, 1>, scalar_prefetch = 0 : i64, scratch_operands = 2 : i64, tpu.core_type = #tpu.core_type<tc>, window_params = [{}, {transform_indices = @transform_1, window_bounds = array<i64: 128, 64>}, {transform_indices = @transform_2, window_bounds = array<i64: 8, 128>}]} {
    %c0_i32 = arith.constant 0 : i32
    %0 = arith.cmpi eq, %arg1, %c0_i32 : i32
    %1 = arith.extui %0 : i1 to i32
    %c0_i32_0 = arith.constant 0 : i32
    %2 = arith.cmpi ne, %1, %c0_i32_0 : i32
    scf.if %2 {
      tpu.enqueue_dma source(%arg2 : memref<64x128xbf16, #tpu.memory_space<any>>) target(%arg5 : memref<64x128xbf16, #tpu.memory_space<vmem>>) target_semaphore(%arg6 : memref<!tpu.dma_semaphore, #tpu.memory_space<semaphore_mem>>)
      tpu.wait_dma2 semaphore(%arg6 : memref<!tpu.dma_semaphore, #tpu.memory_space<semaphore_mem>>) src(%arg2 : memref<64x128xbf16, #tpu.memory_space<any>>) dst(%arg5 : memref<64x128xbf16, #tpu.memory_space<vmem>>)
    } else {
    }
    %c0 = arith.constant 0 : index
    %c0_1 = arith.constant 0 : index
    %3 = vector.load %arg3[%c0, %c0_1] : memref<128x64xbf16, #tpu.memory_space<vmem>>, vector<128x64xbf16>
    %c0_2 = arith.constant 0 : index
    %c0_3 = arith.constant 0 : index
    %4 = vector.load %arg5[%c0_2, %c0_3] : memref<64x128xbf16, #tpu.memory_space<vmem>>, vector<64x128xbf16>
    %cst = arith.constant dense<0.000000e+00> : vector<128x128xf32>
    %5 = tpu.matmul %3, %4, %cst {dimension_numbers = #tpu.dot_dimension_numbers<[1], [0], [0], [1], [0, 0, 1, 1], [], []>} : vector<128x64xbf16>, vector<64x128xbf16>, vector<128x128xf32> -> vector<128x128xf32>
    %c0_i32_4 = arith.constant 0 : i32
    %6 = arith.cmpi eq, %arg1, %c0_i32_4 : i32
    %7 = arith.extui %6 : i1 to i32
    %c0_i32_5 = arith.constant 0 : i32
    %8 = arith.cmpi ne, %7, %c0_i32_5 : i32
    scf.if %8 {
      %cst_15 = arith.constant 0.000000e+00 : f32
      %20 = vector.broadcast %cst_15 : f32 to vector<8x128xf32>
      %c0_16 = arith.constant 0 : index
      %c0_17 = arith.constant 0 : index
      %21 = vector.load %arg4[%c0_16, %c0_17] : memref<8x128xf32, #tpu.memory_space<vmem>>, vector<8x128xf32>
      tpu.vector_store %arg4[%c0_16, %c0_17], %20 {strides = array<i32>} : memref<8x128xf32, #tpu.memory_space<vmem>>, vector<8x128xf32>,
    } else {
    }
    %c0_6 = arith.constant 0 : index
    %c0_7 = arith.constant 0 : index
    %9 = vector.load %arg4[%c0_6, %c0_7] : memref<8x128xf32, #tpu.memory_space<vmem>>, vector<1x128xf32>
    %cst_8 = arith.constant dense<0.000000e+00> : vector<128xf32>
    %10 = vector.multi_reduction <add>, %5, %cst_8 [0] : vector<128x128xf32> to vector<128xf32>
    %11 = vector.shape_cast %10 : vector<128xf32> to vector<1x128xf32>
    %12 = arith.addf %9, %11 : vector<1x128xf32>
    %c0_9 = arith.constant 0 : index
    %c0_10 = arith.constant 0 : index
    %13 = vector.load %arg4[%c0_9, %c0_10] : memref<8x128xf32, #tpu.memory_space<vmem>>, vector<1x128xf32>
    tpu.vector_store %arg4[%c0_9, %c0_10], %12 {strides = array<i32>} : memref<8x128xf32, #tpu.memory_space<vmem>>, vector<1x128xf32>,
    %c1 = arith.constant 1 : index
    %c0_11 = arith.constant 0 : index
    %14 = vector.load %arg4[%c1, %c0_11] : memref<8x128xf32, #tpu.memory_space<vmem>>, vector<1x128xf32>
    %15 = arith.mulf %5, %5 : vector<128x128xf32>
    %cst_12 = arith.constant dense<0.000000e+00> : vector<128xf32>
    %16 = vector.multi_reduction <add>, %15, %cst_12 [0] : vector<128x128xf32> to vector<128xf32>
    %17 = vector.shape_cast %16 : vector<128xf32> to vector<1x128xf32>
    %18 = arith.addf %14, %17 : vector<1x128xf32>
    %c1_13 = arith.constant 1 : index
    %c0_14 = arith.constant 0 : index
    %19 = vector.load %arg4[%c1_13, %c0_14] : memref<8x128xf32, #tpu.memory_space<vmem>>, vector<1x128xf32>
    tpu.vector_store %arg4[%c1_13, %c0_14], %18 {strides = array<i32>} : memref<8x128xf32, #tpu.memory_space<vmem>>, vector<1x128xf32>,
    return
  }
  func.func @transform_1(%arg0: i32, %arg1: i32) -> (i32, i32) {
    %c1_i32 = arith.constant 1 : i32
    %0 = arith.muli %arg0, %c1_i32 : i32
    %1 = arith.addi %0, %arg1 : i32
    %c0_i32 = arith.constant 0 : i32
    %c0_i32_0 = arith.constant 0 : i32
    return %1, %c0_i32 : i32, i32
  }
  func.func @transform_2(%arg0: i32, %arg1: i32) -> (i32, i32) {
    %c0_i32 = arith.constant 0 : i32
    %c0_i32_0 = arith.constant 0 : i32
    return %arg0, %c0_i32 : i32, i32
  }
}

module attributes {stable_mosaic.version = 11 : i64} {
  func.func @_matmul_bn_lrelu_kernel(%arg0: i32, %arg1: i32, %arg2: memref<64x128xbf16, #tpu.memory_space<any>>, %arg3: memref<128x64xbf16, #tpu.memory_space<vmem>>, %arg4: memref<1x128xf32, #tpu.memory_space<vmem>>, %arg5: memref<1x128xf32, #tpu.memory_space<vmem>>, %arg6: memref<128x128xf32, #tpu.memory_space<vmem>>, %arg7: memref<64x128xbf16, #tpu.memory_space<vmem>>, %arg8: memref<!tpu.dma_semaphore, #tpu.memory_space<semaphore_mem>>) attributes {dimension_semantics = [#tpu.dimension_semantics<parallel>, #tpu.dimension_semantics<arbitrary>], iteration_bounds = array<i64: 1, 1>, scalar_prefetch = 0 : i64, scratch_operands = 2 : i64, tpu.core_type = #tpu.core_type<tc>, window_params = [{}, {transform_indices = @transform_1, window_bounds = array<i64: 128, 64>}, {pipeline_mode = #tpu.pipeline_mode<synchronous>, transform_indices = @transform_2, window_bounds = array<i64: 1, 128>}, {pipeline_mode = #tpu.pipeline_mode<synchronous>, transform_indices = @transform_3, window_bounds = array<i64: 1, 128>}, {transform_indices = @transform_4, window_bounds = array<i64: 128, 128>}]} {
    %c0_i32 = arith.constant 0 : i32
    %0 = arith.cmpi eq, %arg1, %c0_i32 : i32
    %1 = arith.extui %0 : i1 to i32
    %c0_i32_0 = arith.constant 0 : i32
    %2 = arith.cmpi ne, %1, %c0_i32_0 : i32
    scf.if %2 {
      tpu.enqueue_dma source(%arg2 : memref<64x128xbf16, #tpu.memory_space<any>>) target(%arg7 : memref<64x128xbf16, #tpu.memory_space<vmem>>) target_semaphore(%arg8 : memref<!tpu.dma_semaphore, #tpu.memory_space<semaphore_mem>>)
      tpu.wait_dma2 semaphore(%arg8 : memref<!tpu.dma_semaphore, #tpu.memory_space<semaphore_mem>>) src(%arg2 : memref<64x128xbf16, #tpu.memory_space<any>>) dst(%arg7 : memref<64x128xbf16, #tpu.memory_space<vmem>>)
    } else {
    }
    %c0 = arith.constant 0 : index
    %c0_1 = arith.constant 0 : index
    %3 = vector.load %arg3[%c0, %c0_1] : memref<128x64xbf16, #tpu.memory_space<vmem>>, vector<128x64xbf16>
    %c0_2 = arith.constant 0 : index
    %c0_3 = arith.constant 0 : index
    %4 = vector.load %arg7[%c0_2, %c0_3] : memref<64x128xbf16, #tpu.memory_space<vmem>>, vector<64x128xbf16>
    %cst = arith.constant dense<0.000000e+00> : vector<128x128xf32>
    %5 = tpu.matmul %3, %4, %cst {dimension_numbers = #tpu.dot_dimension_numbers<[1], [0], [0], [1], [0, 0, 1, 1], [], []>} : vector<128x64xbf16>, vector<64x128xbf16>, vector<128x128xf32> -> vector<128x128xf32>
    %c0_4 = arith.constant 0 : index
    %c0_5 = arith.constant 0 : index
    %6 = vector.load %arg4[%c0_4, %c0_5] : memref<1x128xf32, #tpu.memory_space<vmem>>, vector<1x128xf32>
    %7 = vector.broadcast %6 : vector<1x128xf32> to vector<128x128xf32>
    %8 = arith.mulf %5, %7 : vector<128x128xf32>
    %c0_6 = arith.constant 0 : index
    %c0_7 = arith.constant 0 : index
    %9 = vector.load %arg5[%c0_6, %c0_7] : memref<1x128xf32, #tpu.memory_space<vmem>>, vector<1x128xf32>
    %10 = vector.broadcast %9 : vector<1x128xf32> to vector<128x128xf32>
    %11 = arith.addf %8, %10 : vector<128x128xf32>
    %cst_8 = arith.constant 2.000000e-01 : f32
    %12 = vector.broadcast %cst_8 : f32 to vector<128x128xf32>
    %13 = arith.mulf %12, %11 : vector<128x128xf32>
    %14 = arith.maximumf %11, %13 : vector<128x128xf32>
    %c0_9 = arith.constant 0 : index
    %c0_10 = arith.constant 0 : index
    %15 = vector.load %arg6[%c0_9, %c0_10] : memref<128x128xf32, #tpu.memory_space<vmem>>, vector<128x128xf32>
    tpu.vector_store %arg6[%c0_9, %c0_10], %14 {strides = array<i32>} : memref<128x128xf32, #tpu.memory_space<vmem>>, vector<128x128xf32>,
    return
  }
  func.func @transform_1(%arg0: i32, %arg1: i32) -> (i32, i32) {
    %c1_i32 = arith.constant 1 : i32
    %0 = arith.muli %arg0, %c1_i32 : i32
    %1 = arith.addi %0, %arg1 : i32
    %c0_i32 = arith.constant 0 : i32
    %c0_i32_0 = arith.constant 0 : i32
    return %1, %c0_i32 : i32, i32
  }
  func.func @transform_2(%arg0: i32, %arg1: i32) -> (i32, i32) {
    %c0_i32 = arith.constant 0 : i32
    %c0_i32_0 = arith.constant 0 : i32
    %c0_i32_1 = arith.constant 0 : i32
    return %c0_i32, %c0_i32_0 : i32, i32
  }
  func.func @transform_3(%arg0: i32, %arg1: i32) -> (i32, i32) {
    %c0_i32 = arith.constant 0 : i32
    %c0_i32_0 = arith.constant 0 : i32
    %c0_i32_1 = arith.constant 0 : i32
    return %c0_i32, %c0_i32_0 : i32, i32
  }
  func.func @transform_4(%arg0: i32, %arg1: i32) -> (i32, i32) {
    %c1_i32 = arith.constant 1 : i32
    %0 = arith.muli %arg0, %c1_i32 : i32
    %1 = arith.addi %0, %arg1 : i32
    %c0_i32 = arith.constant 0 : i32
    %c0_i32_0 = arith.constant 0 : i32
    return %1, %c0_i32 : i32, i32
  }
}

</mosaic_0001>

<llo_original>
// kernel: unet_down_forward.2
$region0: #{unet_down_forward.2}
  #allocation0 [shape = 'u32[]', space=smem, size = 0x4, offset = 0x4, fixed_abs, tag = 'smem constant byte address 0x4 - core index']
  #allocation1 [shape = 'u32[144,128]{1,0:T(1,128)}', space=vmem, size = 0x12000, scoped, tag = 'internal scratch']
  #allocation2 [shape = 'bf16[64,128]{1,0:T(16,128)(2,1)}', space=vmem, size = 0x4000, scoped, tag = 'scratch operand']
  #allocation3 [shape = 's32[1]{0}', space=sflag, size = 0x4, scoped, tag = 'scratch operand']
  #allocation8 [shape = 's32[]', space=sflag, size = 0x4, offset = 0, fixed_abs, tag = 'sflag constant byte address 0x0 - dummy sync flag']
  #allocation9 [shape = 's32[]', space=sflag, size = 0x4, offset = 0, fixed_abs, tag = 'sflag constant byte address 0x0 - dummy sync flag']
  #allocation10 [shape = 'u32[]', space=smem, size = 0x4, offset = 0x44, fixed_abs, tag = 'smem constant byte address 0x44 - assertion arg 0']
  #allocation11 [shape = 'u32[]', space=smem, size = 0x4, offset = 0x48, fixed_abs, tag = 'smem constant byte address 0x48 - assertion arg 1']
  %s0 = inlined_call_operand.hbm [shape: bf16[64,128], index: 0, kind: input, shape index: {}]
  %s1 = inlined_call_operand.hbm [shape: bf16[128,64], index: 1, kind: input, shape index: {}]
  %s2 = inlined_call_operand.hbm [shape: f32[8,128], index: 2, kind: output, shape index: {}]
  %s3 = sld [smem:[#allocation0]]
  $region30: #{unet_down_forward.2} parent=0
    _
  %s5 = ssub.s32 1, %s3
  %s6 = scalar_select 0, %s5, %s3
  $region1: #{unet_down_forward.2} parent=0
    #allocation4 [shape = 'u8[32768]{0}', space=vmem, size = 0x8000, scoped, tag = 'input window, operand 1, single buffered']
    #allocation5 [shape = 's32[1]{0}', space=sflag, size = 0x4, scoped, tag = 'scoped memory for unet_down_forward.2']
    #allocation6 [shape = 's32[1]{0}', space=sflag, size = 0x4, scoped, tag = 'scoped memory for unet_down_forward.2']
    #allocation7 [shape = 'u8[4096]{0}', space=vmem, size = 0x1000, scoped, tag = 'output window, operand 0, single buffered']
    %7 = vsyncpa [#allocation5], 0
    %8 = vsyncpa [#allocation6], 0
    // Predicated region
    $region2: #{unet_down_forward.2} parent=1 // pred_check
      _
    $region3: #{unet_down_forward.2} parent=1 // pred_check_branch
      %10 = sbr.rel (0) target = $region5
    $region4: #{unet_down_forward.2} parent=1 // pred_region
      %s11 = sadd.s32 0, 0
      %s12 = smul.u32 16, %s11
      %s14 = ssub.s32 1024, 1024
      %15 = vsyncadd [#allocation5], %s14
      %s16 = smul.addr %s12, 64
      %s17 = scalar_lea.hbm %s1, %s16
      %s18 = sshll.u32 [#allocation4], 4
      %s19 = int_to_ptr.vmem [resolvable:$true] %s18
      %24 = dma.hbm_to_vmem [thread:$0]  %s17, 1024, %s19, [#allocation5], 64, 64, 4
    $region5: #{unet_down_forward.2} parent=1 // pred_fallthru
      _
    // Predicated region
    $region6: #{unet_down_forward.2} parent=1 // pred_check
      _
    $region7: #{unet_down_forward.2} parent=1 // pred_check_branch
      %26 = sbr.rel (0) target = $region9
    $region8: #{unet_down_forward.2} parent=1 // pred_region
      %27 = dma.done [#allocation5], 1024
    $region9: #{unet_down_forward.2} parent=1 // pred_fallthru
      _
    %s28 = sadd.s32 0, 0
    %s29 = smul.u32 16, %s28
    %p31 = scmp.eq.s32.totalorder 0, 0
    // Predicated region
    $region10: #{unet_down_forward.2} parent=1 // pred_check
      %p32 = pneg %p31
    $region11: #{unet_down_forward.2} parent=1 // pred_check_branch
      %34 = sbr.rel (%p32) target = $region13
    $region12: #{unet_down_forward.2} parent=1 // pred_region
      // Predicated region
      $region14: #{unet_down_forward.2} parent=12 // pred_check
        _
      $region15: #{unet_down_forward.2} parent=12 // pred_check_branch
        %36 = sbr.rel target = $region17
      $region16: #{unet_down_forward.2} parent=12 // pred_region
        %37 = sst [smem:[#allocation10]] [#allocation9]
        %38 = sst [smem:[#allocation11]] [#allocation8]
      $region17: #{unet_down_forward.2} parent=12 // pred_fallthru
        _
      %40 = shalt.err (0)
      %s42 = sshll.u32 [#allocation2], 4
      %s43 = int_to_ptr.vmem [resolvable:$true] %s42
      %45 = dma.hbm_to_vmem [thread:$0]  %s0, 512, %s43, [#allocation3]
      %s46 = smul.u32 4, 8
      %s47 = smul.u32 %s46, 1
      %s48 = sshll.u32 %s47, 4
      %49 = dma.done [#allocation3], %s48
    $region13: #{unet_down_forward.2} parent=1 // pred_fallthru
      _
    %v50 = vld [vmem:[#allocation4] sm:$0xf]
    %v51 = vld [vmem:[#allocation4 + $0x4] sm:$0xf]
    %v52 = vld [vmem:[#allocation4 + $0x8] sm:$0xf]
    %v53 = vld [vmem:[#allocation4 + $0xc] sm:$0xf]
    %v54 = vld [vmem:[#allocation4 + $0x10] sm:$0xf]
    %v55 = vld [vmem:[#allocation4 + $0x14] sm:$0xf]
    %v56 = vld [vmem:[#allocation4 + $0x18] sm:$0xf]
    %v57 = vld [vmem:[#allocation4 + $0x1c] sm:$0xf]
    %v58 = vld [vmem:[#allocation4 + $0x20] sm:$0xf]
    %v59 = vld [vmem:[#allocation4 + $0x24] sm:$0xf]
    %v60 = vld [vmem:[#allocation4 + $0x28] sm:$0xf]
    %v61 = vld [vmem:[#allocation4 + $0x2c] sm:$0xf]
    %v62 = vld [vmem:[#allocation4 + $0x30] sm:$0xf]
    %v63 = vld [vmem:[#allocation4 + $0x34] sm:$0xf]
    %v64 = vld [vmem:[#allocation4 + $0x38] sm:$0xf]
    %v65 = vld [vmem:[#allocation4 + $0x3c] sm:$0xf]
    %v66 = vld [vmem:[#allocation2] sm:$0xff]
    %v67 = vld [vmem:[#allocation2 + $0x8] sm:$0xff]
    %v68 = vld [vmem:[#allocation2 + $0x10] sm:$0xff]
    %v69 = vld [vmem:[#allocation2 + $0x18] sm:$0xff]
    %v86 = vunpack.c.l.b16 %v50
    %v87 = vunpack.c.l.b16 %v51
    %v88 = vunpack.c.l.b16 %v52
    %v89 = vunpack.c.l.b16 %v53
    %v90 = vunpack.c.l.b16 %v54
    %v91 = vunpack.c.l.b16 %v55
    %v92 = vunpack.c.l.b16 %v56
    %v93 = vunpack.c.l.b16 %v57
    %v94 = vunpack.c.l.b16 %v58
    %v95 = vunpack.c.l.b16 %v59
    %v96 = vunpack.c.l.b16 %v60
    %v97 = vunpack.c.l.b16 %v61
    %v98 = vunpack.c.l.b16 %v62
    %v99 = vunpack.c.l.b16 %v63
    %v100 = vunpack.c.l.b16 %v64
    %v101 = vunpack.c.l.b16 %v65
    %v102 = vpack.c.b16 %v87, %v86
    %v103 = vpack.c.b16 %v89, %v88
    %v104 = vpack.c.b16 %v91, %v90
    %v105 = vpack.c.b16 %v93, %v92
    %v106 = vpack.c.b16 %v95, %v94
    %v107 = vpack.c.b16 %v97, %v96
    %v108 = vpack.c.b16 %v99, %v98
    %v109 = vpack.c.b16 %v101, %v100
    %vm110 = vcmask 523264
    %v112 = vsel %vm110, %v102, 0
    %v115 = vsel %vm110, %v103, 0
    %v118 = vsel %vm110, %v104, 0
    %v121 = vsel %vm110, %v105, 0
    %v124 = vsel %vm110, %v106, 0
    %v127 = vsel %vm110, %v107, 0
    %v130 = vsel %vm110, %v108, 0
    %v133 = vsel %vm110, %v109, 0
    %135 = vmatprep.subr.bf16.mxu0 0
    %136 = vmatpush1.bf16.msra.mxu0 %v66
    %137 = vmatprep.subr.bf16.mxu0 0
    %138 = vmatpush1.bf16.msra.mxu0 %v67
    %139 = vmatprep.subr.bf16.mxu0 0
    %140 = vmatpush1.bf16.msra.mxu0 %v68
    %141 = vmatprep.subr.bf16.mxu0 0
    %142 = vmatpush1.bf16.msra.mxu0 %v69
    %143 = vmatprep.subr.bf16.mxu0 0
    %144 = vmatpush1.bf16.msra.mxu0 0
    %145 = vmatprep.subr.bf16.mxu0 0
    %146 = vmatpush1.bf16.msra.mxu0 0
    %147 = vmatprep.subr.bf16.mxu0 0
    %148 = vmatpush1.bf16.msra.mxu0 0
    %149 = vmatprep.subr.bf16.mxu0 0
    %150 = vmatpush1.bf16.msra.mxu0 0
    %151 = vmatprep.subr.bf16.mxu0 0
    %152 = vmatpush1.bf16.msra.mxu0 0
    %153 = vmatprep.subr.bf16.mxu0 0
    %154 = vmatpush1.bf16.msra.mxu0 0
    %155 = vmatprep.subr.bf16.mxu0 0
    %156 = vmatpush1.bf16.msra.mxu0 0
    %157 = vmatprep.subr.bf16.mxu0 0
    %158 = vmatpush1.bf16.msra.mxu0 0
    %159 = vmatprep.subr.bf16.mxu0 0
    %160 = vmatpush1.bf16.msra.mxu0 0
    %161 = vmatprep.subr.bf16.mxu0 0
    %162 = vmatpush1.bf16.msra.mxu0 0
    %163 = vmatprep.subr.bf16.mxu0 0
    %164 = vmatpush1.bf16.msra.mxu0 0
    %165 = vmatprep.subr.bf16.mxu0 0
    %166 = vmatpush1.bf16.msra.mxu0 0
    %167 = vmatprep.mubr.bf16.mxu0 0
    %168 = vmatmul.mubr.bf16.gmra.mrb[0].mxu0 %v112
    %v169 = vpop.f32.mrb[0].mxu0
    %v170 = vadd.f32 0.0, %v169
    %v171 = vpop.f32.mrb[0].mxu0
    %v172 = vpop.f32.mrb[0].mxu0
    %v173 = vadd.f32 0.0, %v172
    %v174 = vpop.f32.mrb[0].mxu0
    %175 = vmatprep.mubr.bf16.mxu0 0
    %176 = vmatmul.mubr.bf16.gmra.mrb[0].mxu0 %v115
    %v177 = vpop.f32.mrb[0].mxu0
    %v178 = vadd.f32 0.0, %v177
    %v179 = vpop.f32.mrb[0].mxu0
    %v180 = vpop.f32.mrb[0].mxu0
    %v181 = vadd.f32 0.0, %v180
    %v182 = vpop.f32.mrb[0].mxu0
    %183 = vmatprep.mubr.bf16.mxu0 0
    %184 = vmatmul.mubr.bf16.gmra.mrb[0].mxu0 %v118
    %v185 = vpop.f32.mrb[0].mxu0
    %v186 = vadd.f32 0.0, %v185
    %v187 = vpop.f32.mrb[0].mxu0
    %v188 = vpop.f32.mrb[0].mxu0
    %v189 = vadd.f32 0.0, %v188
    %v190 = vpop.f32.mrb[0].mxu0
    %191 = vmatprep.mubr.bf16.mxu0 0
    %192 = vmatmul.mubr.bf16.gmra.mrb[0].mxu0 %v121
    %v193 = vpop.f32.mrb[0].mxu0
    %v194 = vadd.f32 0.0, %v193
    %v195 = vpop.f32.mrb[0].mxu0
    %v196 = vpop.f32.mrb[0].mxu0
    %v197 = vadd.f32 0.0, %v196
    %v198 = vpop.f32.mrb[0].mxu0
    %199 = vmatprep.mubr.bf16.mxu0 0
    %200 = vmatmul.mubr.bf16.gmra.mrb[0].mxu0 %v124
    %v201 = vpop.f32.mrb[0].mxu0
    %v202 = vadd.f32 0.0, %v201
    %v203 = vpop.f32.mrb[0].mxu0
    %v204 = vpop.f32.mrb[0].mxu0
    %v205 = vadd.f32 0.0, %v204
    %v206 = vpop.f32.mrb[0].mxu0
    %207 = vmatprep.mubr.bf16.mxu0 0
    %208 = vmatmul.mubr.bf16.gmra.mrb[0].mxu0 %v127
    %v209 = vpop.f32.mrb[0].mxu0
    %v210 = vadd.f32 0.0, %v209
    %v211 = vpop.f32.mrb[0].mxu0
    %v212 = vpop.f32.mrb[0].mxu0
    %v213 = vadd.f32 0.0, %v212
    %v214 = vpop.f32.mrb[0].mxu0
    %215 = vmatprep.mubr.bf16.mxu0 0
    %216 = vmatmul.mubr.bf16.gmra.mrb[0].mxu0 %v130
    %v217 = vpop.f32.mrb[0].mxu0
    %v218 = vadd.f32 0.0, %v217
    %v219 = vpop.f32.mrb[0].mxu0
    %v220 = vpop.f32.mrb[0].mxu0
    %v221 = vadd.f32 0.0, %v220
    %v222 = vpop.f32.mrb[0].mxu0
    %223 = vmatprep.mubr.bf16.mxu0 0
    %224 = vmatmul.mubr.bf16.gmra.mrb[0].mxu0 %v133
    %v225 = vpop.f32.mrb[0].mxu0
    %v226 = vadd.f32 0.0, %v225
    %v227 = vpop.f32.mrb[0].mxu0
    %v228 = vpop.f32.mrb[0].mxu0
    %v229 = vadd.f32 0.0, %v228
    %v230 = vpop.f32.mrb[0].mxu0
    %231 = vdwg.mxu0
    // Predicated region
    $region18: #{unet_down_forward.2} parent=1 // pred_check
      %p232 = pneg %p31
    $region19: #{unet_down_forward.2} parent=1 // pred_check_branch
      %234 = sbr.rel (%p232) target = $region21
    $region20: #{unet_down_forward.2} parent=1 // pred_region
      %235 = vst [vmem:[#allocation7] sm:$0xff] 0.0
    $region21: #{unet_down_forward.2} parent=1 // pred_fallthru
      _
    %v236 = vld [vmem:[#allocation7] sm:$0x1]
    %v237 = vadd.f32 %v170, %v173
    %v238 = vadd.f32 %v237, %v178
    %v239 = vadd.f32 %v238, %v181
    %v240 = vadd.f32 %v239, %v186
    %v241 = vadd.f32 %v240, %v189
    %v242 = vadd.f32 %v241, %v194
    %v243 = vadd.f32 %v242, %v197
    %v244 = vadd.f32 %v243, %v202
    %v245 = vadd.f32 %v244, %v205
    %v246 = vadd.f32 %v245, %v210
    %v247 = vadd.f32 %v246, %v213
    %v248 = vadd.f32 %v247, %v218
    %v249 = vadd.f32 %v248, %v221
    %v250 = vadd.f32 %v249, %v226
    %v251 = vadd.f32 %v250, %v229
    %v252 = vrot.slane %v251, 4
    %v253 = vadd.f32 %v251, %v252
    %v254 = vrot.slane %v253, 2
    %v255 = vadd.f32 %v253, %v254
    %v256 = vrot.slane %v255, 1
    %v257 = vadd.f32 %v255, %v256
    %v258 = vadd.f32 %v236, %v257
    %259 = vst [vmem:[#allocation7] sm:$0x1] %v258
    %v260 = vld [vmem:[#allocation7 + $0x1] sm:$0x1]
    %v261 = vmul.f32 %v170, %v170
    %v262 = vmul.f32 %v173, %v173
    %v263 = vmul.f32 %v178, %v178
    %v264 = vmul.f32 %v181, %v181
    %v265 = vmul.f32 %v186, %v186
    %v266 = vmul.f32 %v189, %v189
    %v267 = vmul.f32 %v194, %v194
    %v268 = vmul.f32 %v197, %v197
    %v269 = vmul.f32 %v202, %v202
    %v270 = vmul.f32 %v205, %v205
    %v271 = vmul.f32 %v210, %v210
    %v272 = vmul.f32 %v213, %v213
    %v273 = vmul.f32 %v218, %v218
    %v274 = vmul.f32 %v221, %v221
    %v275 = vmul.f32 %v226, %v226
    %v276 = vmul.f32 %v229, %v229
    %v277 = vadd.f32 %v261, %v262
    %v278 = vadd.f32 %v277, %v263
    %v279 = vadd.f32 %v278, %v264
    %v280 = vadd.f32 %v279, %v265
    %v281 = vadd.f32 %v280, %v266
    %v282 = vadd.f32 %v281, %v267
    %v283 = vadd.f32 %v282, %v268
    %v284 = vadd.f32 %v283, %v269
    %v285 = vadd.f32 %v284, %v270
    %v286 = vadd.f32 %v285, %v271
    %v287 = vadd.f32 %v286, %v272
    %v288 = vadd.f32 %v287, %v273
    %v289 = vadd.f32 %v288, %v274
    %v290 = vadd.f32 %v289, %v275
    %v291 = vadd.f32 %v290, %v276
    %v292 = vrot.slane %v291, 4
    %v293 = vadd.f32 %v291, %v292
    %v294 = vrot.slane %v293, 2
    %v295 = vadd.f32 %v293, %v294
    %v296 = vrot.slane %v295, 1
    %v297 = vadd.f32 %v295, %v296
    %v298 = vadd.f32 %v260, %v297
    %299 = vst [vmem:[#allocation7 + $0x1] sm:$0x1] %v298
    // Predicated region
    $region22: #{unet_down_forward.2} parent=1 // pred_check
      _
    $region23: #{unet_down_forward.2} parent=1 // pred_check_branch
      %301 = sbr.rel (0) target = $region25
    $region24: #{unet_down_forward.2} parent=1 // pred_region
      %s303 = ssub.s32 128, 128
      %304 = vsyncadd [#allocation6], %s303
      %s306 = sshll.u32 [#allocation7], 4
      %s307 = int_to_ptr.vmem [resolvable:$true] %s306
      %309 = dma.vmem_to_hbm [thread:$0]  %s307, 128, %s2, [#allocation6]
    $region25: #{unet_down_forward.2} parent=1 // pred_fallthru
      _
    // Predicated region
    $region26: #{unet_down_forward.2} parent=1 // pred_check
      _
    $region27: #{unet_down_forward.2} parent=1 // pred_check_branch
      %311 = sbr.rel (0) target = $region29
    $region28: #{unet_down_forward.2} parent=1 // pred_region
      %312 = dma.done [#allocation6], 128
    $region29: #{unet_down_forward.2} parent=1 // pred_fallthru
      _
    %313 = vsyncpa [#allocation5], 1
    %314 = vsyncpa [#allocation6], 1
  %315 = vsyncmov [#allocation3]
  %s316 = vpop.sfrf %315
  %p317 = scmp.eq.s32.totalorder %s316, 0
  %p318 = pneg %p317
  %320 = shalt.err (%p318)

// kernel: unet_down_forward.3
$region0: #{unet_down_forward.3}
  #allocation0 [shape = 'u32[]', space=smem, size = 0x4, offset = 0x4, fixed_abs, tag = 'smem constant byte address 0x4 - core index']
  #allocation1 [shape = 'u32[144,128]{1,0:T(1,128)}', space=vmem, size = 0x12000, scoped, tag = 'internal scratch']
  #allocation2 [shape = 'bf16[64,128]{1,0:T(16,128)(2,1)}', space=vmem, size = 0x4000, scoped, tag = 'scratch operand']
  #allocation3 [shape = 's32[1]{0}', space=sflag, size = 0x4, scoped, tag = 'scratch operand']
  #allocation11 [shape = 's32[]', space=sflag, size = 0x4, offset = 0, fixed_abs, tag = 'sflag constant byte address 0x0 - dummy sync flag']
  #allocation12 [shape = 's32[]', space=sflag, size = 0x4, offset = 0, fixed_abs, tag = 'sflag constant byte address 0x0 - dummy sync flag']
  #allocation13 [shape = 'u32[]', space=smem, size = 0x4, offset = 0x44, fixed_abs, tag = 'smem constant byte address 0x44 - assertion arg 0']
  #allocation14 [shape = 'u32[]', space=smem, size = 0x4, offset = 0x48, fixed_abs, tag = 'smem constant byte address 0x48 - assertion arg 1']
  %s0 = inlined_call_operand.hbm [shape: bf16[64,128], index: 0, kind: input, shape index: {}]
  %s1 = inlined_call_operand.hbm [shape: bf16[128,64], index: 1, kind: input, shape index: {}]
  %s2 = inlined_call_operand.hbm [shape: f32[1,128], index: 2, kind: input, shape index: {}]
  %s3 = inlined_call_operand.hbm [shape: f32[1,128], index: 3, kind: input, shape index: {}]
  %s4 = inlined_call_operand.hbm [shape: f32[128,128], index: 4, kind: output, shape index: {}]
  %s5 = sld [smem:[#allocation0]]
  $region42: #{unet_down_forward.3} parent=0
    _
  %s7 = ssub.s32 1, %s5
  %s8 = scalar_select 0, %s7, %s5
  $region1: #{unet_down_forward.3} parent=0
    #allocation4 [shape = 'u8[32768]{0}', space=vmem, size = 0x8000, scoped, tag = 'input window, operand 1, single buffered']
    #allocation5 [shape = 's32[1]{0}', space=sflag, size = 0x4, scoped, tag = 'scoped memory for unet_down_forward.3']
    #allocation6 [shape = 's32[1]{0}', space=sflag, size = 0x4, scoped, tag = 'scoped memory for unet_down_forward.3']
    #allocation7 [shape = 'u8[512]{0}', space=vmem, size = 0x400, scoped, tag = 'input window, operand 2, single buffered']
    #allocation8 [shape = 's32[1]{0}', space=sflag, size = 0x4, scoped, tag = 'scoped memory for unet_down_forward.3']
    #allocation9 [shape = 'u8[512]{0}', space=vmem, size = 0x400, scoped, tag = 'input window, operand 3, single buffered']
    #allocation10 [shape = 'u8[65536]{0}', space=vmem, size = 0x10000, scoped, tag = 'output window, operand 0, single buffered']
    %9 = vsyncpa [#allocation5], 0
    %10 = vsyncpa [#allocation8], 0
    %11 = vsyncpa [#allocation6], 0
    // Predicated region
    $region2: #{unet_down_forward.3} parent=1 // pred_check
      _
    $region3: #{unet_down_forward.3} parent=1 // pred_check_branch
      %13 = sbr.rel (0) target = $region5
    $region4: #{unet_down_forward.3} parent=1 // pred_region
      %s14 = sadd.s32 0, 0
      %s15 = smul.u32 16, %s14
      %s17 = ssub.s32 1024, 1024
      %18 = vsyncadd [#allocation5], %s17
      %s19 = smul.addr %s15, 64
      %s20 = scalar_lea.hbm %s1, %s19
      %s21 = sshll.u32 [#allocation4], 4
      %s22 = int_to_ptr.vmem [resolvable:$true] %s21
      %27 = dma.hbm_to_vmem [thread:$0]  %s20, 1024, %s22, [#allocation5], 64, 64, 4
    $region5: #{unet_down_forward.3} parent=1 // pred_fallthru
      _
    // Predicated region
    $region6: #{unet_down_forward.3} parent=1 // pred_check
      _
    $region7: #{unet_down_forward.3} parent=1 // pred_check_branch
      %29 = sbr.rel (0) target = $region9
    $region8: #{unet_down_forward.3} parent=1 // pred_region
      %s31 = ssub.s32 16, 16
      %32 = vsyncadd [#allocation8], %s31
      %s34 = sshll.u32 [#allocation7], 4
      %s35 = int_to_ptr.vmem [resolvable:$true] %s34
      %37 = dma.hbm_to_vmem [thread:$0]  %s2, 16, %s35, [#allocation8]
    $region9: #{unet_down_forward.3} parent=1 // pred_fallthru
      _
    // Predicated region
    $region10: #{unet_down_forward.3} parent=1 // pred_check
      _
    $region11: #{unet_down_forward.3} parent=1 // pred_check_branch
      %39 = sbr.rel (0) target = $region13
    $region12: #{unet_down_forward.3} parent=1 // pred_region
      %s41 = ssub.s32 16, 16
      %42 = vsyncadd [#allocation8], %s41
      %s44 = sshll.u32 [#allocation9], 4
      %s45 = int_to_ptr.vmem [resolvable:$true] %s44
      %47 = dma.hbm_to_vmem [thread:$0]  %s3, 16, %s45, [#allocation8]
    $region13: #{unet_down_forward.3} parent=1 // pred_fallthru
      _
    // Predicated region
    $region14: #{unet_down_forward.3} parent=1 // pred_check
      _
    $region15: #{unet_down_forward.3} parent=1 // pred_check_branch
      %49 = sbr.rel (0) target = $region17
    $region16: #{unet_down_forward.3} parent=1 // pred_region
      %50 = dma.done [#allocation5], 1024
    $region17: #{unet_down_forward.3} parent=1 // pred_fallthru
      _
    // Predicated region
    $region18: #{unet_down_forward.3} parent=1 // pred_check
      _
    $region19: #{unet_down_forward.3} parent=1 // pred_check_branch
      %52 = sbr.rel (0) target = $region21
    $region20: #{unet_down_forward.3} parent=1 // pred_region
      %53 = dma.done [#allocation8], 16
    $region21: #{unet_down_forward.3} parent=1 // pred_fallthru
      _
    // Predicated region
    $region22: #{unet_down_forward.3} parent=1 // pred_check
      _
    $region23: #{unet_down_forward.3} parent=1 // pred_check_branch
      %55 = sbr.rel (0) target = $region25
    $region24: #{unet_down_forward.3} parent=1 // pred_region
      %56 = dma.done [#allocation8], 16
    $region25: #{unet_down_forward.3} parent=1 // pred_fallthru
      _
    %s57 = sadd.s32 0, 0
    %s58 = smul.u32 16, %s57
    %s59 = sadd.s32 0, 0
    %s60 = smul.u32 16, %s59
    %p62 = scmp.eq.s32.totalorder 0, 0
    // Predicated region
    $region26: #{unet_down_forward.3} parent=1 // pred_check
      %p63 = pneg %p62
    $region27: #{unet_down_forward.3} parent=1 // pred_check_branch
      %65 = sbr.rel (%p63) target = $region29
    $region28: #{unet_down_forward.3} parent=1 // pred_region
      // Predicated region
      $region30: #{unet_down_forward.3} parent=28 // pred_check
        _
      $region31: #{unet_down_forward.3} parent=28 // pred_check_branch
        %67 = sbr.rel target = $region33
      $region32: #{unet_down_forward.3} parent=28 // pred_region
        %68 = sst [smem:[#allocation13]] [#allocation12]
        %69 = sst [smem:[#allocation14]] [#allocation11]
      $region33: #{unet_down_forward.3} parent=28 // pred_fallthru
        _
      %71 = shalt.err (0)
      %s73 = sshll.u32 [#allocation2], 4
      %s74 = int_to_ptr.vmem [resolvable:$true] %s73
      %76 = dma.hbm_to_vmem [thread:$0]  %s0, 512, %s74, [#allocation3]
      %s77 = smul.u32 4, 8
      %s78 = smul.u32 %s77, 1
      %s79 = sshll.u32 %s78, 4
      %80 = dma.done [#allocation3], %s79
    $region29: #{unet_down_forward.3} parent=1 // pred_fallthru
      _
    %v81 = vld [vmem:[#allocation4] sm:$0xf]
    %v82 = vld [vmem:[#allocation4 + $0x4] sm:$0xf]
    %v83 = vld [vmem:[#allocation4 + $0x8] sm:$0xf]
    %v84 = vld [vmem:[#allocation4 + $0xc] sm:$0xf]
    %v85 = vld [vmem:[#allocation4 + $0x10] sm:$0xf]
    %v86 = vld [vmem:[#allocation4 + $0x14] sm:$0xf]
    %v87 = vld [vmem:[#allocation4 + $0x18] sm:$0xf]
    %v88 = vld [vmem:[#allocation4 + $0x1c] sm:$0xf]
    %v89 = vld [vmem:[#allocation4 + $0x20] sm:$0xf]
    %v90 = vld [vmem:[#allocation4 + $0x24] sm:$0xf]
    %v91 = vld [vmem:[#allocation4 + $0x28] sm:$0xf]
    %v92 = vld [vmem:[#allocation4 + $0x2c] sm:$0xf]
    %v93 = vld [vmem:[#allocation4 + $0x30] sm:$0xf]
    %v94 = vld [vmem:[#allocation4 + $0x34] sm:$0xf]
    %v95 = vld [vmem:[#allocation4 + $0x38] sm:$0xf]
    %v96 = vld [vmem:[#allocation4 + $0x3c] sm:$0xf]
    %v97 = vld [vmem:[#allocation2] sm:$0xff]
    %v98 = vld [vmem:[#allocation2 + $0x8] sm:$0xff]
    %v99 = vld [vmem:[#allocation2 + $0x10] sm:$0xff]
    %v100 = vld [vmem:[#allocation2 + $0x18] sm:$0xff]
    %v117 = vunpack.c.l.b16 %v81
    %v118 = vunpack.c.l.b16 %v82
    %v119 = vunpack.c.l.b16 %v83
    %v120 = vunpack.c.l.b16 %v84
    %v121 = vunpack.c.l.b16 %v85
    %v122 = vunpack.c.l.b16 %v86
    %v123 = vunpack.c.l.b16 %v87
    %v124 = vunpack.c.l.b16 %v88
    %v125 = vunpack.c.l.b16 %v89
    %v126 = vunpack.c.l.b16 %v90
    %v127 = vunpack.c.l.b16 %v91
    %v128 = vunpack.c.l.b16 %v92
    %v129 = vunpack.c.l.b16 %v93
    %v130 = vunpack.c.l.b16 %v94
    %v131 = vunpack.c.l.b16 %v95
    %v132 = vunpack.c.l.b16 %v96
    %v133 = vpack.c.b16 %v118, %v117
    %v134 = vpack.c.b16 %v120, %v119
    %v135 = vpack.c.b16 %v122, %v121
    %v136 = vpack.c.b16 %v124, %v123
    %v137 = vpack.c.b16 %v126, %v125
    %v138 = vpack.c.b16 %v128, %v127
    %v139 = vpack.c.b16 %v130, %v129
    %v140 = vpack.c.b16 %v132, %v131
    %vm141 = vcmask 523264
    %v143 = vsel %vm141, %v133, 0
    %v146 = vsel %vm141, %v134, 0
    %v149 = vsel %vm141, %v135, 0
    %v152 = vsel %vm141, %v136, 0
    %v155 = vsel %vm141, %v137, 0
    %v158 = vsel %vm141, %v138, 0
    %v161 = vsel %vm141, %v139, 0
    %v164 = vsel %vm141, %v140, 0
    %166 = vmatprep.subr.bf16.mxu0 0
    %167 = vmatpush1.bf16.msra.mxu0 %v97
    %168 = vmatprep.subr.bf16.mxu0 0
    %169 = vmatpush1.bf16.msra.mxu0 %v98
    %170 = vmatprep.subr.bf16.mxu0 0
    %171 = vmatpush1.bf16.msra.mxu0 %v99
    %172 = vmatprep.subr.bf16.mxu0 0
    %173 = vmatpush1.bf16.msra.mxu0 %v100
    %174 = vmatprep.subr.bf16.mxu0 0
    %175 = vmatpush1.bf16.msra.mxu0 0
    %176 = vmatprep.subr.bf16.mxu0 0
    %177 = vmatpush1.bf16.msra.mxu0 0
    %178 = vmatprep.subr.bf16.mxu0 0
    %179 = vmatpush1.bf16.msra.mxu0 0
    %180 = vmatprep.subr.bf16.mxu0 0
    %181 = vmatpush1.bf16.msra.mxu0 0
    %182 = vmatprep.subr.bf16.mxu0 0
    %183 = vmatpush1.bf16.msra.mxu0 0
    %184 = vmatprep.subr.bf16.mxu0 0
    %185 = vmatpush1.bf16.msra.mxu0 0
    %186 = vmatprep.subr.bf16.mxu0 0
    %187 = vmatpush1.bf16.msra.mxu0 0
    %188 = vmatprep.subr.bf16.mxu0 0
    %189 = vmatpush1.bf16.msra.mxu0 0
    %190 = vmatprep.subr.bf16.mxu0 0
    %191 = vmatpush1.bf16.msra.mxu0 0
    %192 = vmatprep.subr.bf16.mxu0 0
    %193 = vmatpush1.bf16.msra.mxu0 0
    %194 = vmatprep.subr.bf16.mxu0 0
    %195 = vmatpush1.bf16.msra.mxu0 0
    %196 = vmatprep.subr.bf16.mxu0 0
    %197 = vmatpush1.bf16.msra.mxu0 0
    %198 = vmatprep.mubr.bf16.mxu0 0
    %199 = vmatmul.mubr.bf16.gmra.mrb[0].mxu0 %v143
    %v200 = vpop.f32.mrb[0].mxu0
    %v201 = vadd.f32 0.0, %v200
    %v202 = vpop.f32.mrb[0].mxu0
    %v203 = vpop.f32.mrb[0].mxu0
    %v204 = vadd.f32 0.0, %v203
    %v205 = vpop.f32.mrb[0].mxu0
    %206 = vmatprep.mubr.bf16.mxu0 0
    %207 = vmatmul.mubr.bf16.gmra.mrb[0].mxu0 %v146
    %v208 = vpop.f32.mrb[0].mxu0
    %v209 = vadd.f32 0.0, %v208
    %v210 = vpop.f32.mrb[0].mxu0
    %v211 = vpop.f32.mrb[0].mxu0
    %v212 = vadd.f32 0.0, %v211
    %v213 = vpop.f32.mrb[0].mxu0
    %214 = vmatprep.mubr.bf16.mxu0 0
    %215 = vmatmul.mubr.bf16.gmra.mrb[0].mxu0 %v149
    %v216 = vpop.f32.mrb[0].mxu0
    %v217 = vadd.f32 0.0, %v216
    %v218 = vpop.f32.mrb[0].mxu0
    %v219 = vpop.f32.mrb[0].mxu0
    %v220 = vadd.f32 0.0, %v219
    %v221 = vpop.f32.mrb[0].mxu0
    %222 = vmatprep.mubr.bf16.mxu0 0
    %223 = vmatmul.mubr.bf16.gmra.mrb[0].mxu0 %v152
    %v224 = vpop.f32.mrb[0].mxu0
    %v225 = vadd.f32 0.0, %v224
    %v226 = vpop.f32.mrb[0].mxu0
    %v227 = vpop.f32.mrb[0].mxu0
    %v228 = vadd.f32 0.0, %v227
    %v229 = vpop.f32.mrb[0].mxu0
    %230 = vmatprep.mubr.bf16.mxu0 0
    %231 = vmatmul.mubr.bf16.gmra.mrb[0].mxu0 %v155
    %v232 = vpop.f32.mrb[0].mxu0
    %v233 = vadd.f32 0.0, %v232
    %v234 = vpop.f32.mrb[0].mxu0
    %v235 = vpop.f32.mrb[0].mxu0
    %v236 = vadd.f32 0.0, %v235
    %v237 = vpop.f32.mrb[0].mxu0
    %238 = vmatprep.mubr.bf16.mxu0 0
    %239 = vmatmul.mubr.bf16.gmra.mrb[0].mxu0 %v158
    %v240 = vpop.f32.mrb[0].mxu0
    %v241 = vadd.f32 0.0, %v240
    %v242 = vpop.f32.mrb[0].mxu0
    %v243 = vpop.f32.mrb[0].mxu0
    %v244 = vadd.f32 0.0, %v243
    %v245 = vpop.f32.mrb[0].mxu0
    %246 = vmatprep.mubr.bf16.mxu0 0
    %247 = vmatmul.mubr.bf16.gmra.mrb[0].mxu0 %v161
    %v248 = vpop.f32.mrb[0].mxu0
    %v249 = vadd.f32 0.0, %v248
    %v250 = vpop.f32.mrb[0].mxu0
    %v251 = vpop.f32.mrb[0].mxu0
    %v252 = vadd.f32 0.0, %v251
    %v253 = vpop.f32.mrb[0].mxu0
    %254 = vmatprep.mubr.bf16.mxu0 0
    %255 = vmatmul.mubr.bf16.gmra.mrb[0].mxu0 %v164
    %v256 = vpop.f32.mrb[0].mxu0
    %v257 = vadd.f32 0.0, %v256
    %v258 = vpop.f32.mrb[0].mxu0
    %v259 = vpop.f32.mrb[0].mxu0
    %v260 = vadd.f32 0.0, %v259
    %v261 = vpop.f32.mrb[0].mxu0
    %262 = vdwg.mxu0
    %v263 = vld [vmem:[#allocation7] sm:$0x1]
    %v265 = vlaneseq
    %v266 = vshrl.u32 %v265, 7
    %v267 = vsub.s32 0, %v266
    %v268 = vrot.slane %v263, %v267
    %v270 = vmul.f32 %v201, %v268
    %v271 = vmul.f32 %v204, %v268
    %v272 = vmul.f32 %v209, %v268
    %v273 = vmul.f32 %v212, %v268
    %v274 = vmul.f32 %v217, %v268
    %v275 = vmul.f32 %v220, %v268
    %v276 = vmul.f32 %v225, %v268
    %v277 = vmul.f32 %v228, %v268
    %v278 = vmul.f32 %v233, %v268
    %v279 = vmul.f32 %v236, %v268
    %v280 = vmul.f32 %v241, %v268
    %v281 = vmul.f32 %v244, %v268
    %v282 = vmul.f32 %v249, %v268
    %v283 = vmul.f32 %v252, %v268
    %v284 = vmul.f32 %v257, %v268
    %v285 = vmul.f32 %v260, %v268
    %v286 = vld [vmem:[#allocation9] sm:$0x1]
    %v288 = vlaneseq
    %v289 = vshrl.u32 %v288, 7
    %v290 = vsub.s32 0, %v289
    %v291 = vrot.slane %v286, %v290
    %v293 = vadd.f32 %v270, %v291
    %v294 = vadd.f32 %v271, %v291
    %v295 = vadd.f32 %v272, %v291
    %v296 = vadd.f32 %v273, %v291
    %v297 = vadd.f32 %v274, %v291
    %v298 = vadd.f32 %v275, %v291
    %v299 = vadd.f32 %v276, %v291
    %v300 = vadd.f32 %v277, %v291
    %v301 = vadd.f32 %v278, %v291
    %v302 = vadd.f32 %v279, %v291
    %v303 = vadd.f32 %v280, %v291
    %v304 = vadd.f32 %v281, %v291
    %v305 = vadd.f32 %v282, %v291
    %v306 = vadd.f32 %v283, %v291
    %v307 = vadd.f32 %v284, %v291
    %v308 = vadd.f32 %v285, %v291
    %v309 = vmul.f32 %v293, 0.2
    %v310 = vmul.f32 %v294, 0.2
    %v311 = vmul.f32 %v295, 0.2
    %v312 = vmul.f32 %v296, 0.2
    %v313 = vmul.f32 %v297, 0.2
    %v314 = vmul.f32 %v298, 0.2
    %v315 = vmul.f32 %v299, 0.2
    %v316 = vmul.f32 %v300, 0.2
    %v317 = vmul.f32 %v301, 0.2
    %v318 = vmul.f32 %v302, 0.2
    %v319 = vmul.f32 %v303, 0.2
    %v320 = vmul.f32 %v304, 0.2
    %v321 = vmul.f32 %v305, 0.2
    %v322 = vmul.f32 %v306, 0.2
    %v323 = vmul.f32 %v307, 0.2
    %v324 = vmul.f32 %v308, 0.2
    %v325 = vmax.f32 %v293, %v309
    %v326 = vmax.f32 %v294, %v310
    %v327 = vmax.f32 %v295, %v311
    %v328 = vmax.f32 %v296, %v312
    %v329 = vmax.f32 %v297, %v313
    %v330 = vmax.f32 %v298, %v314
    %v331 = vmax.f32 %v299, %v315
    %v332 = vmax.f32 %v300, %v316
    %v333 = vmax.f32 %v301, %v317
    %v334 = vmax.f32 %v302, %v318
    %v335 = vmax.f32 %v303, %v319
    %v336 = vmax.f32 %v304, %v320
    %v337 = vmax.f32 %v305, %v321
    %v338 = vmax.f32 %v306, %v322
    %v339 = vmax.f32 %v307, %v323
    %v340 = vmax.f32 %v308, %v324
    %341 = vst [vmem:[#allocation10] sm:$0xff] %v325
    %342 = vst [vmem:[#allocation10 + $0x8] sm:$0xff] %v326
    %343 = vst [vmem:[#allocation10 + $0x10] sm:$0xff] %v327
    %344 = vst [vmem:[#allocation10 + $0x18] sm:$0xff] %v328
    %345 = vst [vmem:[#allocation10 + $0x20] sm:$0xff] %v329
    %346 = vst [vmem:[#allocation10 + $0x28] sm:$0xff] %v330
    %347 = vst [vmem:[#allocation10 + $0x30] sm:$0xff] %v331
    %348 = vst [vmem:[#allocation10 + $0x38] sm:$0xff] %v332
    %349 = vst [vmem:[#allocation10 + $0x40] sm:$0xff] %v333
    %350 = vst [vmem:[#allocation10 + $0x48] sm:$0xff] %v334
    %351 = vst [vmem:[#allocation10 + $0x50] sm:$0xff] %v335
    %352 = vst [vmem:[#allocation10 + $0x58] sm:$0xff] %v336
    %353 = vst [vmem:[#allocation10 + $0x60] sm:$0xff] %v337
    %354 = vst [vmem:[#allocation10 + $0x68] sm:$0xff] %v338
    %355 = vst [vmem:[#allocation10 + $0x70] sm:$0xff] %v339
    %356 = vst [vmem:[#allocation10 + $0x78] sm:$0xff] %v340
    // Predicated region
    $region34: #{unet_down_forward.3} parent=1 // pred_check
      _
    $region35: #{unet_down_forward.3} parent=1 // pred_check_branch
      %358 = sbr.rel (0) target = $region37
    $region36: #{unet_down_forward.3} parent=1 // pred_region
      %s359 = sadd.s32 0, 0
      %s360 = smul.u32 16, %s359
      %s362 = ssub.s32 2048, 2048
      %363 = vsyncadd [#allocation6], %s362
      %s364 = smul.addr %s360, 128
      %s365 = scalar_lea.hbm %s4, %s364
      %s366 = sshll.u32 [#allocation10], 4
      %s367 = int_to_ptr.vmem [resolvable:$true] %s366
      %372 = dma.vmem_to_hbm [thread:$0]  %s367, 2048, %s365, [#allocation6], 128, 128, 8
    $region37: #{unet_down_forward.3} parent=1 // pred_fallthru
      _
    // Predicated region
    $region38: #{unet_down_forward.3} parent=1 // pred_check
      _
    $region39: #{unet_down_forward.3} parent=1 // pred_check_branch
      %374 = sbr.rel (0) target = $region41
    $region40: #{unet_down_forward.3} parent=1 // pred_region
      %375 = dma.done [#allocation6], 2048
    $region41: #{unet_down_forward.3} parent=1 // pred_fallthru
      _
    %376 = vsyncpa [#allocation5], 1
    %377 = vsyncpa [#allocation8], 1
    %378 = vsyncpa [#allocation6], 1
  %379 = vsyncmov [#allocation3]
  %s380 = vpop.sfrf %379
  %p381 = scmp.eq.s32.totalorder %s380, 0
  %p382 = pneg %p381
  %384 = shalt.err (%p382)

</llo_original>
